<compile_context>
chip_gen: v5e
topology: v5e:2x2
jax: 0.10.0
libtpu: 0.0.40
codegen_flags: <defaults>
</compile_context>

<pallas_src>
import jax
import jax.numpy as jnp
from jax.experimental import pallas as pl
from jax.experimental.pallas import tpu as pltpu


def el_kernel(cand_ref, ment_ref, sent_ref, cos_ref,
              w1m_ref, w1c_ref, b1_ref, w2s_ref, w2e_ref,
              w2cos_ref, b2_ref, out_ref):
    Bt, M, Cp, Dc = cand_ref.shape
    De = w1m_ref.shape[1]
    Ds = sent_ref.shape[2]
    Rm = Bt * M          # mention rows in this block
    R = Rm * Cp          # candidate rows in this block

    # All reshapes below only split/merge leading dims or keep the last dim,
    # with Cp a multiple of 8 -> sublane-aligned free views (no relayout).
    ment2 = ment_ref[...].reshape(Rm, Dc)          # (Rm, Dc)
    cand2 = cand_ref[...].reshape(R, Dc)           # (R, Dc)
    sent2 = sent_ref[...].reshape(Bt, Ds)          # (Bt, Ds)
    cos2 = cos_ref[...].reshape(Rm, Cp)            # (Rm, Cp)

    # --- mlp_embed: Linear(concat([mention, candidate]) -> De) + ReLU.
    # Concat matmul is split; the mention half runs at Rm rows (Cp x fewer).
    hm = jnp.dot(ment2, w1m_ref[...],
                 preferred_element_type=jnp.float32)                 # (Rm, De)
    hc = jnp.dot(cand2, w1c_ref[...],
                 preferred_element_type=jnp.float32)                 # (R, De)
    h = jnp.maximum(hm[:, None, :] + hc.reshape(Rm, Cp, De)
                    + b1_ref[...], 0.0)                              # (Rm, Cp, De)

    # --- mlp_score: Linear(concat([sentence, h, cos]) -> 1), split over concat.
    sent_sc = jnp.sum(sent2 * w2s_ref[...], axis=-1, keepdims=True)  # (Bt, 1)
    h_sc = jnp.sum(h * w2e_ref[...].reshape(1, 1, De), axis=-1)      # (Rm, Cp)
    score = h_sc + cos2 * w2cos_ref[0] + b2_ref[0]                   # (Rm, Cp)
    # natural output layout: (Bt, M, Cp); sentence term broadcasts per batch.
    out_ref[...] = score.reshape(Bt, M, Cp) + sent_sc[:, :, None]


def _tpu_geometry():
    """(vmem_capacity_bytes, num_tensorcores) with conservative fallbacks."""
    vmem = 64 * 1024 * 1024                      # conservative: v7x per-TC VMEM
    try:
        vmem = int(pltpu.get_tpu_info().vmem_capacity_bytes)
    except Exception:
        pass
    n_tc = 1                                     # v5e / v6e: single TensorCore
    try:
        kind = (jax.devices()[0].device_kind or "").lower()
        if "v7" in kind:
            n_tc = 2                             # v7x: 2 TCs per chip
    except Exception:
        pass
    return vmem, n_tc


def entity_linking_forward(cand_emb, ment_emb, sent_emb, params,
                           num_mention, matmul_dtype=jnp.float32):
    B, MC, Lw, Dc = cand_emb.shape
    M = num_mention
    C = MC // M
    _, Ls, Ds = sent_emb.shape
    De = params["w1m"].shape[1]

    # ---- glue (XLA): embedding gather + length-mean pre-reduction ------------
    # TODO(synk): verify in the HLO that these means fuse with the jnp.take
    # gathers; an un-fused pre-reduction adds a full-tensor HBM round trip.
    cand = jnp.mean(cand_emb.astype(jnp.float32), axis=2).reshape(B, M, C, Dc)
    ment = jnp.mean(ment_emb.astype(jnp.float32), axis=2)               # (B, M, Dc)
    sent = jnp.mean(sent_emb.astype(jnp.float32), axis=1).reshape(B, 1, Ds)

    # Cosine similarity hoisted out of the kernel (lane-starved reductions over
    # the largest per-step tensor); fused with the means above. f32 throughout
    # to hold torch.nn.CosineSimilarity(eps=1e-6) semantics at 1e-4 accuracy.
    dots = jnp.einsum('bmcd,bmd->bmc', cand, ment)
    na = jnp.sqrt(jnp.sum(ment * ment, axis=-1))[:, :, None]            # (B, M, 1)
    nb = jnp.sqrt(jnp.sum(cand * cand, axis=-1))                        # (B, M, C)
    cos = dots / jnp.maximum(na * nb, 1e-6)                             # (B, M, C)

    # ---- pad C up to a sublane multiple (free in-kernel reshapes) ------------
    Cp = ((C + 7) // 8) * 8
    if Cp != C:
        cand = jnp.pad(cand, ((0, 0), (0, 0), (0, Cp - C), (0, 0)))
        cos = jnp.pad(cos, ((0, 0), (0, 0), (0, Cp - C)))

    # ---- batch folding sized by VMEM bytes (generation-aware) ----------------
    vmem_bytes, n_tc = _tpu_geometry()
    f4 = 4
    blk_per_elem = (M * Cp * Dc + M * Dc + Ds + 2 * M * Cp) * f4   # in/out blocks
    inter_per_elem = (M * De + 2 * M * Cp * De + 3 * M * Cp) * f4  # hm, hc, h, temps
    per_elem = 2 * blk_per_elem + inter_per_elem                   # x2: double buffer
    weight_bytes = (2 * Dc * De + 2 * De + Ds + 2) * f4
    budget = int(0.40 * vmem_bytes)
    Bt_max = max(1, (budget - weight_bytes) // per_elem)

    if n_tc > 1:
        # v7x: need >= n_tc grid steps (multiple of n_tc) so the "parallel"
        # axis shards across both TensorCores.
        n_steps = max(n_tc, pl.cdiv(B, Bt_max))
        n_steps = n_tc * pl.cdiv(n_steps, n_tc)
        Bt = pl.cdiv(B, n_steps)
    else:
        # v5e / v6e: grid is a serial loop -> one fat step when it fits.
        Bt = min(B, Bt_max)
        n_steps = pl.cdiv(B, Bt)
    Bp = n_steps * Bt
    if Bp != B:
        pad = Bp - B
        cand = jnp.pad(cand, ((0, pad), (0, 0), (0, 0), (0, 0)))
        ment = jnp.pad(ment, ((0, pad), (0, 0), (0, 0)))
        sent = jnp.pad(sent, ((0, pad), (0, 0), (0, 0)))
        cos = jnp.pad(cos, ((0, pad), (0, 0), (0, 0)))

    # Matmul operands only may be bf16 (v6e/v7x MXU path, halves cand DMA);
    # biases, cosine and the f32 accumulators keep full precision.
    cand_mm = cand.astype(matmul_dtype)
    ment_mm = ment.astype(matmul_dtype)
    w1m = params["w1m"].astype(matmul_dtype)               # (Dc, De)
    w1c = params["w1c"].astype(matmul_dtype)               # (Dc, De)
    b1 = params["b1"].reshape(1, De).astype(jnp.float32)
    w2s_row = params["w2s"].reshape(1, Ds).astype(jnp.float32)
    w2e_row = params["w2e"].reshape(1, De).astype(jnp.float32)
    w2cos = params["w2cos"].reshape(1).astype(jnp.float32)  # SMEM scalar
    b2 = params["b2"].reshape(1).astype(jnp.float32)        # SMEM scalar

    # vmem_limit from the actual block footprint (+margin), capped at physical.
    footprint = weight_bytes + Bt * per_elem
    vmem_limit = int(min(0.9 * vmem_bytes, max(1.5 * footprint, 32 * 2 ** 20)))

    grid_spec = pltpu.PrefetchScalarGridSpec(
        num_scalar_prefetch=0,
        grid=(n_steps,),
        in_specs=[
            pl.BlockSpec((Bt, M, Cp, Dc), lambda i: (i, 0, 0, 0)),
            pl.BlockSpec((Bt, M, Dc), lambda i: (i, 0, 0)),
            pl.BlockSpec((Bt, 1, Ds), lambda i: (i, 0, 0)),
            pl.BlockSpec((Bt, M, Cp), lambda i: (i, 0, 0)),
            pl.BlockSpec((Dc, De), lambda i: (0, 0)),
            pl.BlockSpec((Dc, De), lambda i: (0, 0)),
            pl.BlockSpec((1, De), lambda i: (0, 0)),
            pl.BlockSpec((1, Ds), lambda i: (0, 0)),
            pl.BlockSpec((1, De), lambda i: (0, 0)),
            pl.BlockSpec(memory_space=pltpu.MemorySpace.SMEM),
            pl.BlockSpec(memory_space=pltpu.MemorySpace.SMEM),
        ],
        out_specs=pl.BlockSpec((Bt, M, Cp), lambda i: (i, 0, 0)),
    )

    out = pl.pallas_call(
        el_kernel,
        out_shape=jax.ShapeDtypeStruct((Bp, M, Cp), jnp.float32),
        grid_spec=grid_spec,
        compiler_params=pltpu.CompilerParams(
            dimension_semantics=("parallel",),
            vmem_limit_bytes=vmem_limit),
    )(cand_mm, ment_mm, sent, cos, w1m, w1c, b1, w2s_row, w2e_row, w2cos, b2)

    # Slice off batch padding and the zero-padded candidate columns.
    return out[:B, :, :C]


def reference(cand_emb, ment_emb, sent_emb, params, M, C):
    """Pure-JAX mirror of the PyTorch forward (for correctness check)."""
    B = cand_emb.shape[0]
    cand = jnp.mean(cand_emb, axis=-2).reshape(B, M, C, -1)
    ment = jnp.mean(ment_emb, axis=-2)[:, :, None, :]
    ment = jnp.broadcast_to(ment, cand.shape)
    sent = jnp.mean(sent_emb, axis=1)

    dots = jnp.sum(ment * cand, -1, keepdims=True)
    na = jnp.linalg.norm(ment, axis=-1, keepdims=True)
    nb = jnp.linalg.norm(cand, axis=-1, keepdims=True)
    cos = dots / jnp.maximum(na * nb, 1e-6)

    w1 = jnp.concatenate([params["w1m"], params["w1c"]], axis=0)
    h = jnp.maximum(jnp.concatenate([ment, cand], -1) @ w1 + params["b1"], 0.0)

    sent4 = jnp.broadcast_to(sent[:, None, None, :],
                             (B, M, C, sent.shape[-1]))
    feats = jnp.concatenate([sent4, h, cos], axis=-1)
    w2 = jnp.concatenate([params["w2s"], params["w2e"], params["w2cos"]], axis=0)
    score = feats @ w2 + params["b2"]
    return score.reshape(B, M, C)


if __name__ == "__main__":
    # small shapes implied by the module's __init__ arguments
    B, M, C = 2, 4, 6              # batch, num_mention, num_candidate
    Lw, Lc, Ls = 5, 7, 9           # max_length_word / seq_char / seq_sence
    Dc, Ds, De = 16, 24, 32        # dim_char, sentence dim, mlp_embed dim
    Vc, Vs = 50, 100               # char vocab, sentence vocab

    key = jax.random.PRNGKey(0)
    ks = jax.random.split(key, 12)

    idx_cand = jax.random.randint(ks[0], (B, M * C, Lw), 0, Vc)
    idx_ment = jax.random.randint(ks[1], (B, M, Lc), 0, Vc)
    idx_sent = jax.random.randint(ks[2], (B, Ls), 0, Vs)

    char_table = jax.random.normal(ks[3], (Vc, Dc), jnp.float32)
    sent_table = jax.random.normal(ks[4], (Vs, Ds), jnp.float32)

    params = dict(
        w1m=jax.random.normal(ks[5], (Dc, De), jnp.float32) * 0.1,
        w1c=jax.random.normal(ks[6], (Dc, De), jnp.float32) * 0.1,
        b1=jax.random.normal(ks[7], (1, De), jnp.float32) * 0.1,
        w2s=jax.random.normal(ks[8], (Ds, 1), jnp.float32) * 0.1,
        w2e=jax.random.normal(ks[9], (De, 1), jnp.float32) * 0.1,
        w2cos=jax.random.normal(ks[10], (1, 1), jnp.float32) * 0.1,
        b2=jax.random.normal(ks[11], (1, 1), jnp.float32) * 0.1,
    )

    # TODO(synk): char_embed / sentence_embed table lookups are data-dependent
    # gathers with no clean small-shape Pallas equivalent; kept in XLA as glue.
    cand_emb = jnp.take(char_table, idx_cand, axis=0)   # (B, M*C, Lw, Dc)
    ment_emb = jnp.take(char_table, idx_ment, axis=0)   # (B, M, Lc, Dc)
    sent_emb = jnp.take(sent_table, idx_sent, axis=0)   # (B, Ls, Ds)

    ref = reference(cand_emb, ment_emb, sent_emb, params, M, C)

    # f32 matmul operands: strict check vs. the pure-JAX reference.
    out = entity_linking_forward(cand_emb, ment_emb, sent_emb, params, M,
                                 matmul_dtype=jnp.float32)
    out = jax.block_until_ready(out)
    assert out.shape == (B, M, C), out.shape
    assert jnp.allclose(out, ref, atol=1e-4, rtol=1e-4), (out, ref)

    # bf16 matmul operands (native v6e/v7x MXU path, half the cand DMA bytes):
    # f32 accumulation / cosine keep the result close; looser tolerance.
    out_bf16 = entity_linking_forward(cand_emb, ment_emb, sent_emb, params, M,
                                      matmul_dtype=jnp.bfloat16)
    out_bf16 = jax.block_until_ready(out_bf16)
    assert out_bf16.shape == (B, M, C), out_bf16.shape
    assert jnp.allclose(out_bf16, ref, atol=3e-2, rtol=3e-2), (out_bf16, ref)

    print("KERNEL_OK")
</pallas_src>

<mosaic_0001>
module attributes {stable_mosaic.version = 11 : i64} {
  func.func @el_kernel(%arg0: i32, %arg1: memref<2x4x8x16xf32, #tpu.memory_space<vmem>>, %arg2: memref<2x4x16xf32, #tpu.memory_space<vmem>>, %arg3: memref<2x1x24xf32, #tpu.memory_space<vmem>>, %arg4: memref<2x4x8xf32, #tpu.memory_space<vmem>>, %arg5: memref<16x32xf32, #tpu.memory_space<vmem>>, %arg6: memref<16x32xf32, #tpu.memory_space<vmem>>, %arg7: memref<1x32xf32, #tpu.memory_space<vmem>>, %arg8: memref<1x24xf32, #tpu.memory_space<vmem>>, %arg9: memref<1x32xf32, #tpu.memory_space<vmem>>, %arg10: memref<1xf32, #tpu.memory_space<smem>>, %arg11: memref<1xf32, #tpu.memory_space<smem>>, %arg12: memref<2x4x8xf32, #tpu.memory_space<vmem>>) attributes {dimension_semantics = [#tpu.dimension_semantics<parallel>], iteration_bounds = array<i64: 1>, scalar_prefetch = 0 : i64, scratch_operands = 0 : i64, tpu.core_type = #tpu.core_type<tc>, window_params = [{transform_indices = @transform_0, window_bounds = array<i64: 2, 4, 8, 16>}, {transform_indices = @transform_1, window_bounds = array<i64: 2, 4, 16>}, {transform_indices = @transform_2, window_bounds = array<i64: 2, 1, 24>}, {transform_indices = @transform_3, window_bounds = array<i64: 2, 4, 8>}, {pipeline_mode = #tpu.pipeline_mode<synchronous>, transform_indices = @transform_4, window_bounds = array<i64: 16, 32>}, {pipeline_mode = #tpu.pipeline_mode<synchronous>, transform_indices = @transform_5, window_bounds = array<i64: 16, 32>}, {pipeline_mode = #tpu.pipeline_mode<synchronous>, transform_indices = @transform_6, window_bounds = array<i64: 1, 32>}, {pipeline_mode = #tpu.pipeline_mode<synchronous>, transform_indices = @transform_7, window_bounds = array<i64: 1, 24>}, {pipeline_mode = #tpu.pipeline_mode<synchronous>, transform_indices = @transform_8, window_bounds = array<i64: 1, 32>}, {transform_indices = @transform_9, window_bounds = array<i64: 1>}, {transform_indices = @transform_10, window_bounds = array<i64: 1>}, {transform_indices = @transform_11, window_bounds = array<i64: 2, 4, 8>}]} {
    %c0 = arith.constant 0 : index
    %c0_0 = arith.constant 0 : index
    %c0_1 = arith.constant 0 : index
    %0 = vector.load %arg2[%c0, %c0_0, %c0_1] : memref<2x4x16xf32, #tpu.memory_space<vmem>>, vector<2x4x16xf32>
    %1 = vector.shape_cast %0 : vector<2x4x16xf32> to vector<8x16xf32>
    %c0_2 = arith.constant 0 : index
    %c0_3 = arith.constant 0 : index
    %c0_4 = arith.constant 0 : index
    %c0_5 = arith.constant 0 : index
    %2 = vector.load %arg1[%c0_2, %c0_3, %c0_4, %c0_5] : memref<2x4x8x16xf32, #tpu.memory_space<vmem>>, vector<2x4x8x16xf32>
    %3 = vector.shape_cast %2 : vector<2x4x8x16xf32> to vector<64x16xf32>
    %c0_6 = arith.constant 0 : index
    %c0_7 = arith.constant 0 : index
    %c0_8 = arith.constant 0 : index
    %4 = vector.load %arg3[%c0_6, %c0_7, %c0_8] : memref<2x1x24xf32, #tpu.memory_space<vmem>>, vector<2x1x24xf32>
    %5 = vector.shape_cast %4 : vector<2x1x24xf32> to vector<2x24xf32>
    %c0_9 = arith.constant 0 : index
    %c0_10 = arith.constant 0 : index
    %c0_11 = arith.constant 0 : index
    %6 = vector.load %arg4[%c0_9, %c0_10, %c0_11] : memref<2x4x8xf32, #tpu.memory_space<vmem>>, vector<2x4x8xf32>
    %7 = vector.shape_cast %6 : vector<2x4x8xf32> to vector<8x8xf32>
    %c0_12 = arith.constant 0 : index
    %c0_13 = arith.constant 0 : index
    %8 = vector.load %arg5[%c0_12, %c0_13] : memref<16x32xf32, #tpu.memory_space<vmem>>, vector<16x32xf32>
    %cst = arith.constant dense<0.000000e+00> : vector<8x32xf32>
    %9 = tpu.matmul %1, %8, %cst {dimension_numbers = #tpu.dot_dimension_numbers<[1], [0], [0], [1], [0, 0, 1, 1], [], []>} : vector<8x16xf32>, vector<16x32xf32>, vector<8x32xf32> -> vector<8x32xf32>
    %c0_14 = arith.constant 0 : index
    %c0_15 = arith.constant 0 : index
    %10 = vector.load %arg6[%c0_14, %c0_15] : memref<16x32xf32, #tpu.memory_space<vmem>>, vector<16x32xf32>
    %cst_16 = arith.constant dense<0.000000e+00> : vector<64x32xf32>
    %11 = tpu.matmul %3, %10, %cst_16 {dimension_numbers = #tpu.dot_dimension_numbers<[1], [0], [0], [1], [0, 0, 1, 1], [], []>} : vector<64x16xf32>, vector<16x32xf32>, vector<64x32xf32> -> vector<64x32xf32>
    %12 = vector.shape_cast %9 : vector<8x32xf32> to vector<8x1x32xf32>
    %13 = vector.shape_cast %11 : vector<64x32xf32> to vector<8x8x32xf32>
    %14 = vector.broadcast %12 : vector<8x1x32xf32> to vector<8x8x32xf32>
    %15 = arith.addf %14, %13 : vector<8x8x32xf32>
    %c0_17 = arith.constant 0 : index
    %c0_18 = arith.constant 0 : index
    %16 = vector.load %arg7[%c0_17, %c0_18] : memref<1x32xf32, #tpu.memory_space<vmem>>, vector<1x32xf32>
    %17 = vector.shape_cast %16 : vector<1x32xf32> to vector<1x1x32xf32>
    %18 = vector.broadcast %17 : vector<1x1x32xf32> to vector<8x8x32xf32>
    %19 = arith.addf %15, %18 : vector<8x8x32xf32>
    %cst_19 = arith.constant 0.000000e+00 : f32
    %20 = vector.broadcast %cst_19 : f32 to vector<8x8x32xf32>
    %21 = arith.maximumf %19, %20 : vector<8x8x32xf32>
    %c0_20 = arith.constant 0 : index
    %c0_21 = arith.constant 0 : index
    %22 = vector.load %arg8[%c0_20, %c0_21] : memref<1x24xf32, #tpu.memory_space<vmem>>, vector<1x24xf32>
    %23 = vector.broadcast %22 : vector<1x24xf32> to vector<2x24xf32>
    %24 = arith.mulf %5, %23 : vector<2x24xf32>
    %cst_22 = arith.constant dense<0.000000e+00> : vector<2xf32>
    %25 = vector.multi_reduction <add>, %24, %cst_22 [1] : vector<2x24xf32> to vector<2xf32>
    %26 = vector.shape_cast %25 : vector<2xf32> to vector<2x1xf32>
    %c0_23 = arith.constant 0 : index
    %c0_24 = arith.constant 0 : index
    %27 = vector.load %arg9[%c0_23, %c0_24] : memref<1x32xf32, #tpu.memory_space<vmem>>, vector<1x32xf32>
    %28 = vector.shape_cast %27 : vector<1x32xf32> to vector<1x1x32xf32>
    %29 = vector.broadcast %28 : vector<1x1x32xf32> to vector<8x8x32xf32>
    %30 = arith.mulf %21, %29 : vector<8x8x32xf32>
    %cst_25 = arith.constant dense<0.000000e+00> : vector<8x8xf32>
    %31 = vector.multi_reduction <add>, %30, %cst_25 [2] : vector<8x8x32xf32> to vector<8x8xf32>
    %c0_26 = arith.constant 0 : index
    %32 = memref.load %arg10[%c0_26] : memref<1xf32, #tpu.memory_space<smem>>
    %33 = vector.broadcast %32 : f32 to vector<8x8xf32>
    %34 = arith.mulf %7, %33 : vector<8x8xf32>
    %35 = arith.addf %31, %34 : vector<8x8xf32>
    %c0_27 = arith.constant 0 : index
    %36 = memref.load %arg11[%c0_27] : memref<1xf32, #tpu.memory_space<smem>>
    %37 = vector.broadcast %36 : f32 to vector<8x8xf32>
    %38 = arith.addf %35, %37 : vector<8x8xf32>
    %39 = vector.shape_cast %38 : vector<8x8xf32> to vector<2x4x8xf32>
    %40 = vector.shape_cast %26 : vector<2x1xf32> to vector<2x1x1xf32>
    %41 = vector.broadcast %40 : vector<2x1x1xf32> to vector<2x4x8xf32>
    %42 = arith.addf %39, %41 : vector<2x4x8xf32>
    %c0_28 = arith.constant 0 : index
    %c0_29 = arith.constant 0 : index
    %c0_30 = arith.constant 0 : index
    %43 = vector.load %arg12[%c0_28, %c0_29, %c0_30] : memref<2x4x8xf32, #tpu.memory_space<vmem>>, vector<2x4x8xf32>
    tpu.vector_store %arg12[%c0_28, %c0_29, %c0_30], %42 {strides = array<i32>} : memref<2x4x8xf32, #tpu.memory_space<vmem>>, vector<2x4x8xf32>,
    return
  }
  func.func @transform_0(%arg0: i32) -> (i32, i32, i32, i32) {
    %c0_i32 = arith.constant 0 : i32
    %c0_i32_0 = arith.constant 0 : i32
    %c0_i32_1 = arith.constant 0 : i32
    %c0_i32_2 = arith.constant 0 : i32
    return %arg0, %c0_i32, %c0_i32_0, %c0_i32_1 : i32, i32, i32, i32
  }
  func.func @transform_1(%arg0: i32) -> (i32, i32, i32) {
    %c0_i32 = arith.constant 0 : i32
    %c0_i32_0 = arith.constant 0 : i32
    %c0_i32_1 = arith.constant 0 : i32
    return %arg0, %c0_i32, %c0_i32_0 : i32, i32, i32
  }
  func.func @transform_2(%arg0: i32) -> (i32, i32, i32) {
    %c0_i32 = arith.constant 0 : i32
    %c0_i32_0 = arith.constant 0 : i32
    %c0_i32_1 = arith.constant 0 : i32
    return %arg0, %c0_i32, %c0_i32_0 : i32, i32, i32
  }
  func.func @transform_3(%arg0: i32) -> (i32, i32, i32) {
    %c0_i32 = arith.constant 0 : i32
    %c0_i32_0 = arith.constant 0 : i32
    %c0_i32_1 = arith.constant 0 : i32
    return %arg0, %c0_i32, %c0_i32_0 : i32, i32, i32
  }
  func.func @transform_4(%arg0: i32) -> (i32, i32) {
    %c0_i32 = arith.constant 0 : i32
    %c0_i32_0 = arith.constant 0 : i32
    %c0_i32_1 = arith.constant 0 : i32
    return %c0_i32, %c0_i32_0 : i32, i32
  }
  func.func @transform_5(%arg0: i32) -> (i32, i32) {
    %c0_i32 = arith.constant 0 : i32
    %c0_i32_0 = arith.constant 0 : i32
    %c0_i32_1 = arith.constant 0 : i32
    return %c0_i32, %c0_i32_0 : i32, i32
  }
  func.func @transform_6(%arg0: i32) -> (i32, i32) {
    %c0_i32 = arith.constant 0 : i32
    %c0_i32_0 = arith.constant 0 : i32
    %c0_i32_1 = arith.constant 0 : i32
    return %c0_i32, %c0_i32_0 : i32, i32
  }
  func.func @transform_7(%arg0: i32) -> (i32, i32) {
    %c0_i32 = arith.constant 0 : i32
    %c0_i32_0 = arith.constant 0 : i32
    %c0_i32_1 = arith.constant 0 : i32
    return %c0_i32, %c0_i32_0 : i32, i32
  }
  func.func @transform_8(%arg0: i32) -> (i32, i32) {
    %c0_i32 = arith.constant 0 : i32
    %c0_i32_0 = arith.constant 0 : i32
    %c0_i32_1 = arith.constant 0 : i32
    return %c0_i32, %c0_i32_0 : i32, i32
  }
  func.func @transform_9(%arg0: i32) -> i32 {
    %c0_i32 = arith.constant 0 : i32
    %c0_i32_0 = arith.constant 0 : i32
    return %c0_i32 : i32
  }
  func.func @transform_10(%arg0: i32) -> i32 {
    %c0_i32 = arith.constant 0 : i32
    %c0_i32_0 = arith.constant 0 : i32
    return %c0_i32 : i32
  }
  func.func @transform_11(%arg0: i32) -> (i32, i32, i32) {
    %c0_i32 = arith.constant 0 : i32
    %c0_i32_0 = arith.constant 0 : i32
    %c0_i32_1 = arith.constant 0 : i32
    return %arg0, %c0_i32, %c0_i32_0 : i32, i32, i32
  }
}

</mosaic_0001>

<llo_original>
// kernel: tpu_custom_call.1
$region0: #{tpu_custom_call.1}
  #allocation0 [shape = 'u32[]', space=smem, size = 0x4, offset = 0x4, fixed_abs, tag = 'smem constant byte address 0x4 - core index']
  #allocation1 [shape = 'u32[72,128]{1,0:T(1,128)}', space=vmem, size = 0x9000, scoped, tag = 'internal scratch']
  #allocation2 [shape = 'f32[1]{0:T(128)S(6)}', space=smem, size = 0x200, scoped, tag = 'scoped memory for tpu_custom_call.1']
  #allocation3 [shape = 'f32[1]{0:T(128)S(6)}', space=smem, size = 0x200, scoped, tag = 'scoped memory for tpu_custom_call.1']
  %s0 = inlined_call_operand.hbm [shape: f32[2,4,8,16], index: 0, kind: input, shape index: {}]
  %s1 = inlined_call_operand.hbm [shape: f32[2,4,16], index: 1, kind: input, shape index: {}]
  %s2 = inlined_call_operand.vmem [shape: f32[2,1,24], index: 2, kind: input, shape index: {}]
  %s3 = inlined_call_operand.hbm [shape: f32[2,4,8], index: 3, kind: input, shape index: {}]
  %s4 = inlined_call_operand.hbm [shape: f32[16,32], index: 4, kind: input, shape index: {}]
  %s5 = inlined_call_operand.hbm [shape: f32[16,32], index: 5, kind: input, shape index: {}]
  %s6 = inlined_call_operand.vmem [shape: f32[1,32], index: 6, kind: input, shape index: {}]
  %s7 = inlined_call_operand.vmem [shape: f32[1,24], index: 7, kind: input, shape index: {}]
  %s8 = inlined_call_operand.vmem [shape: f32[1,32], index: 8, kind: input, shape index: {}]
  %s9 = inlined_call_operand.<no memory space> [shape: f32[1], index: 9, kind: input, shape index: {}]
  %s10 = inlined_call_operand.<no memory space> [shape: f32[1], index: 10, kind: input, shape index: {}]
  %s11 = inlined_call_operand.hbm [shape: f32[2,4,8], index: 11, kind: output, shape index: {}]
  %s12 = sld [smem:[#allocation0]]
  $region74: #{tpu_custom_call.1} parent=0
    _
  %s14 = ssub.s32 1, %s12
  %s15 = scalar_select 0, %s14, %s12
  %16 = sst [smem:[#allocation2]] %s9
  %17 = sst [smem:[#allocation3]] %s10
  $region1: #{tpu_custom_call.1} parent=0
    #allocation4 [shape = 'u8[32768]{0}', space=vmem, size = 0x8000, scoped, tag = 'input window, operand 0, single buffered']
    #allocation5 [shape = 's32[1]{0}', space=sflag, size = 0x4, scoped, tag = 'scoped memory for tpu_custom_call.1']
    #allocation6 [shape = 's32[1]{0}', space=sflag, size = 0x4, scoped, tag = 'scoped memory for tpu_custom_call.1']
    #allocation7 [shape = 'u8[4096]{0}', space=vmem, size = 0x1000, scoped, tag = 'input window, operand 1, single buffered']
    #allocation8 [shape = 's32[1]{0}', space=sflag, size = 0x4, scoped, tag = 'scoped memory for tpu_custom_call.1']
    #allocation9 [shape = 'u8[4096]{0}', space=vmem, size = 0x1000, scoped, tag = 'input window, operand 3, single buffered']
    #allocation10 [shape = 'u8[8192]{0}', space=vmem, size = 0x2000, scoped, tag = 'input window, operand 4, single buffered']
    #allocation11 [shape = 's32[1]{0}', space=sflag, size = 0x4, scoped, tag = 'scoped memory for tpu_custom_call.1']
    #allocation12 [shape = 'u8[8192]{0}', space=vmem, size = 0x2000, scoped, tag = 'input window, operand 5, single buffered']
    #allocation13 [shape = 'u8[4096]{0}', space=vmem, size = 0x1000, scoped, tag = 'output window, operand 0, single buffered']
    %18 = vsyncpa [#allocation5], 0
    %19 = vsyncpa [#allocation8], 0
    %20 = vsyncpa [#allocation11], 0
    %21 = vsyncpa [#allocation6], 0
    // Predicated region
    $region2: #{tpu_custom_call.1} parent=1 // pred_check
      _
    $region3: #{tpu_custom_call.1} parent=1 // pred_check_branch
      %23 = sbr.rel (0) target = $region5
    $region4: #{tpu_custom_call.1} parent=1 // pred_region
      %25 = vsyncadd [#allocation5], 0
      %s26 = sshll.u32 %s0, 4
      %s27 = int_to_ptr.hbm [resolvable:$true] %s26
      %s28 = sshll.u32 [#allocation4], 4
      %s29 = int_to_ptr.vmem [resolvable:$true] %s28
      %34 = dma.hbm_to_vmem [thread:$0]  %s27, 1024, %s29, [#allocation5], 128, 128, 8
    $region5: #{tpu_custom_call.1} parent=1 // pred_fallthru
      _
    // Predicated region
    $region6: #{tpu_custom_call.1} parent=1 // pred_check
      _
    $region7: #{tpu_custom_call.1} parent=1 // pred_check_branch
      %36 = sbr.rel (0) target = $region9
    $region8: #{tpu_custom_call.1} parent=1 // pred_region
      %38 = vsyncadd [#allocation8], 0
      %s39 = sshll.u32 %s1, 4
      %s40 = int_to_ptr.hbm [resolvable:$true] %s39
      %s41 = sshll.u32 [#allocation7], 4
      %s42 = int_to_ptr.vmem [resolvable:$true] %s41
      %47 = dma.hbm_to_vmem [thread:$0]  %s40, 128, %s42, [#allocation8], 64, 64, 4
    $region9: #{tpu_custom_call.1} parent=1 // pred_fallthru
      _
    // Predicated region
    $region10: #{tpu_custom_call.1} parent=1 // pred_check
      _
    $region11: #{tpu_custom_call.1} parent=1 // pred_check_branch
      %49 = sbr.rel (0) target = $region13
    $region12: #{tpu_custom_call.1} parent=1 // pred_region
      _
    $region13: #{tpu_custom_call.1} parent=1 // pred_fallthru
      _
    // Predicated region
    $region14: #{tpu_custom_call.1} parent=1 // pred_check
      _
    $region15: #{tpu_custom_call.1} parent=1 // pred_check_branch
      %51 = sbr.rel (0) target = $region17
    $region16: #{tpu_custom_call.1} parent=1 // pred_region
      %53 = vsyncadd [#allocation8], 0
      %s54 = sshll.u32 %s3, 4
      %s55 = int_to_ptr.hbm [resolvable:$true] %s54
      %s56 = sshll.u32 [#allocation9], 4
      %s57 = int_to_ptr.vmem [resolvable:$true] %s56
      %62 = dma.hbm_to_vmem [thread:$0]  %s55, 128, %s57, [#allocation8], 64, 64, 4
    $region17: #{tpu_custom_call.1} parent=1 // pred_fallthru
      _
    // Predicated region
    $region18: #{tpu_custom_call.1} parent=1 // pred_check
      _
    $region19: #{tpu_custom_call.1} parent=1 // pred_check_branch
      %64 = sbr.rel (0) target = $region21
    $region20: #{tpu_custom_call.1} parent=1 // pred_region
      %66 = vsyncadd [#allocation11], 0
      %s67 = sshll.u32 %s4, 4
      %s68 = int_to_ptr.hbm [resolvable:$true] %s67
      %s69 = sshll.u32 [#allocation10], 4
      %s70 = int_to_ptr.vmem [resolvable:$true] %s69
      %75 = dma.hbm_to_vmem [thread:$0]  %s68, 256, %s70, [#allocation11], 128, 128, 8
    $region21: #{tpu_custom_call.1} parent=1 // pred_fallthru
      _
    // Predicated region
    $region22: #{tpu_custom_call.1} parent=1 // pred_check
      _
    $region23: #{tpu_custom_call.1} parent=1 // pred_check_branch
      %77 = sbr.rel (0) target = $region25
    $region24: #{tpu_custom_call.1} parent=1 // pred_region
      %79 = vsyncadd [#allocation11], 0
      %s80 = sshll.u32 %s5, 4
      %s81 = int_to_ptr.hbm [resolvable:$true] %s80
      %s82 = sshll.u32 [#allocation12], 4
      %s83 = int_to_ptr.vmem [resolvable:$true] %s82
      %88 = dma.hbm_to_vmem [thread:$0]  %s81, 256, %s83, [#allocation11], 128, 128, 8
    $region25: #{tpu_custom_call.1} parent=1 // pred_fallthru
      _
    // Predicated region
    $region26: #{tpu_custom_call.1} parent=1 // pred_check
      _
    $region27: #{tpu_custom_call.1} parent=1 // pred_check_branch
      %90 = sbr.rel (0) target = $region29
    $region28: #{tpu_custom_call.1} parent=1 // pred_region
      _
    $region29: #{tpu_custom_call.1} parent=1 // pred_fallthru
      _
    // Predicated region
    $region30: #{tpu_custom_call.1} parent=1 // pred_check
      _
    $region31: #{tpu_custom_call.1} parent=1 // pred_check_branch
      %92 = sbr.rel (0) target = $region33
    $region32: #{tpu_custom_call.1} parent=1 // pred_region
      _
    $region33: #{tpu_custom_call.1} parent=1 // pred_fallthru
      _
    // Predicated region
    $region34: #{tpu_custom_call.1} parent=1 // pred_check
      _
    $region35: #{tpu_custom_call.1} parent=1 // pred_check_branch
      %94 = sbr.rel (0) target = $region37
    $region36: #{tpu_custom_call.1} parent=1 // pred_region
      _
    $region37: #{tpu_custom_call.1} parent=1 // pred_fallthru
      _
    // Predicated region
    $region38: #{tpu_custom_call.1} parent=1 // pred_check
      _
    $region39: #{tpu_custom_call.1} parent=1 // pred_check_branch
      %96 = sbr.rel (0) target = $region41
    $region40: #{tpu_custom_call.1} parent=1 // pred_region
      _
    $region41: #{tpu_custom_call.1} parent=1 // pred_fallthru
      _
    // Predicated region
    $region42: #{tpu_custom_call.1} parent=1 // pred_check
      _
    $region43: #{tpu_custom_call.1} parent=1 // pred_check_branch
      %98 = sbr.rel (0) target = $region45
    $region44: #{tpu_custom_call.1} parent=1 // pred_region
      _
    $region45: #{tpu_custom_call.1} parent=1 // pred_fallthru
      _
    // Predicated region
    $region46: #{tpu_custom_call.1} parent=1 // pred_check
      _
    $region47: #{tpu_custom_call.1} parent=1 // pred_check_branch
      %100 = sbr.rel (0) target = $region49
    $region48: #{tpu_custom_call.1} parent=1 // pred_region
      %102 = dma.done [#allocation5], 1024
    $region49: #{tpu_custom_call.1} parent=1 // pred_fallthru
      _
    // Predicated region
    $region50: #{tpu_custom_call.1} parent=1 // pred_check
      _
    $region51: #{tpu_custom_call.1} parent=1 // pred_check_branch
      %104 = sbr.rel (0) target = $region53
    $region52: #{tpu_custom_call.1} parent=1 // pred_region
      %106 = dma.done [#allocation8], 128
    $region53: #{tpu_custom_call.1} parent=1 // pred_fallthru
      _
    // Predicated region
    $region54: #{tpu_custom_call.1} parent=1 // pred_check
      _
    $region55: #{tpu_custom_call.1} parent=1 // pred_check_branch
      %108 = sbr.rel (0) target = $region57
    $region56: #{tpu_custom_call.1} parent=1 // pred_region
      %110 = dma.done [#allocation8], 128
    $region57: #{tpu_custom_call.1} parent=1 // pred_fallthru
      _
    // Predicated region
    $region58: #{tpu_custom_call.1} parent=1 // pred_check
      _
    $region59: #{tpu_custom_call.1} parent=1 // pred_check_branch
      %112 = sbr.rel (0) target = $region61
    $region60: #{tpu_custom_call.1} parent=1 // pred_region
      %114 = dma.done [#allocation11], 256
    $region61: #{tpu_custom_call.1} parent=1 // pred_fallthru
      _
    // Predicated region
    $region62: #{tpu_custom_call.1} parent=1 // pred_check
      _
    $region63: #{tpu_custom_call.1} parent=1 // pred_check_branch
      %116 = sbr.rel (0) target = $region65
    $region64: #{tpu_custom_call.1} parent=1 // pred_region
      %118 = dma.done [#allocation11], 256
    $region65: #{tpu_custom_call.1} parent=1 // pred_fallthru
      _
    %v119 = vld [vmem:[#allocation7] sm:$0xf]
    %v120 = vld [vmem:[#allocation7 + $0x4] sm:$0xf]
    %v121 = vld [vmem:[#allocation4] sm:$0xff]
    %v122 = vld [vmem:[#allocation4 + $0x8] sm:$0xff]
    %v123 = vld [vmem:[#allocation4 + $0x10] sm:$0xff]
    %v124 = vld [vmem:[#allocation4 + $0x18] sm:$0xff]
    %v125 = vld [vmem:[#allocation4 + $0x20] sm:$0xff]
    %v126 = vld [vmem:[#allocation4 + $0x28] sm:$0xff]
    %v127 = vld [vmem:[#allocation4 + $0x30] sm:$0xff]
    %v128 = vld [vmem:[#allocation4 + $0x38] sm:$0xff]
    %v129 = vld [vmem:[%s2] sm:$0x1]
    %v130 = vld [vmem:[%s2 + $0x1] sm:$0x1]
    %v131 = vld [vmem:[#allocation9] sm:$0xf]
    %v132 = vld [vmem:[#allocation9 + $0x4] sm:$0xf]
    %v133 = vld [vmem:[#allocation10] sm:$0xff]
    %v134 = vld [vmem:[#allocation10 + $0x8] sm:$0xff]
    %137 = vst [vmem:[#allocation1] ss:$2 sm:$0xff] %v119
    %s138 = scalar_lea.vmem [#allocation1], 1
    %139 = vst [vmem:[%s138] ss:$2 sm:$0xff] %v120
    %v140 = vld.sshfl [vmem:[#allocation1] sm:$0xff pattern:$0x75316420]
    %vm141 = vcmask 130048
    %v142 = vsel %vm141, %v140, 0
    %144 = vmatpush.msra.mxu0 0.0
    %145 = vmatpush.msra.mxu0 0.0
    %146 = vmatpush.msra.mxu0 0.0
    %147 = vmatpush.msra.mxu0 0.0
    %148 = vmatpush.msra.mxu0 0.0
    %149 = vmatpush.msra.mxu0 0.0
    %150 = vmatpush.msra.mxu0 0.0
    %151 = vmatpush.msra.mxu0 0.0
    %152 = vmatpush.msra.mxu0 0.0
    %153 = vmatpush.msra.mxu0 0.0
    %154 = vmatpush.msra.mxu0 0.0
    %155 = vmatpush.msra.mxu0 0.0
    %156 = vmatpush.msra.mxu0 0.0
    %157 = vmatpush.msra.mxu0 0.0
    %158 = vmatpush.msra.mxu0 %v134
    %159 = vmatpush.msra.mxu0 %v133
    %160 = vmatmul.f32.gmra.mxu0 %v142
    %v161 = vpop.f32.mrf.mxu0
    %v162 = vadd.f32 0.0, %v161
    %163 = vdwg.mxu0
    %v164 = vld [vmem:[#allocation12] sm:$0xff]
    %v165 = vld [vmem:[#allocation12 + $0x8] sm:$0xff]
    %v167 = vsel %vm141, %v121, 0
    %v170 = vsel %vm141, %v122, 0
    %v173 = vsel %vm141, %v123, 0
    %v176 = vsel %vm141, %v124, 0
    %v179 = vsel %vm141, %v125, 0
    %v182 = vsel %vm141, %v126, 0
    %v185 = vsel %vm141, %v127, 0
    %v188 = vsel %vm141, %v128, 0
    %190 = vmatpush.msra.mxu0 0.0
    %191 = vmatpush.msra.mxu0 0.0
    %192 = vmatpush.msra.mxu0 0.0
    %193 = vmatpush.msra.mxu0 0.0
    %194 = vmatpush.msra.mxu0 0.0
    %195 = vmatpush.msra.mxu0 0.0
    %196 = vmatpush.msra.mxu0 0.0
    %197 = vmatpush.msra.mxu0 0.0
    %198 = vmatpush.msra.mxu0 0.0
    %199 = vmatpush.msra.mxu0 0.0
    %200 = vmatpush.msra.mxu0 0.0
    %201 = vmatpush.msra.mxu0 0.0
    %202 = vmatpush.msra.mxu0 0.0
    %203 = vmatpush.msra.mxu0 0.0
    %204 = vmatpush.msra.mxu0 %v165
    %205 = vmatpush.msra.mxu0 %v164
    %206 = vmatmul.f32.gmra.mxu0 %v167
    %v207 = vpop.f32.mrf.mxu0
    %v208 = vadd.f32 0.0, %v207
    %209 = vmatmul.f32.gmra.mxu0 %v170
    %v210 = vpop.f32.mrf.mxu0
    %v211 = vadd.f32 0.0, %v210
    %212 = vmatmul.f32.gmra.mxu0 %v173
    %v213 = vpop.f32.mrf.mxu0
    %v214 = vadd.f32 0.0, %v213
    %215 = vmatmul.f32.gmra.mxu0 %v176
    %v216 = vpop.f32.mrf.mxu0
    %v217 = vadd.f32 0.0, %v216
    %218 = vmatmul.f32.gmra.mxu0 %v179
    %v219 = vpop.f32.mrf.mxu0
    %v220 = vadd.f32 0.0, %v219
    %221 = vmatmul.f32.gmra.mxu0 %v182
    %v222 = vpop.f32.mrf.mxu0
    %v223 = vadd.f32 0.0, %v222
    %224 = vmatmul.f32.gmra.mxu0 %v185
    %v225 = vpop.f32.mrf.mxu0
    %v226 = vadd.f32 0.0, %v225
    %227 = vmatmul.f32.gmra.mxu0 %v188
    %v228 = vpop.f32.mrf.mxu0
    %v229 = vadd.f32 0.0, %v228
    %230 = vdwg.mxu0
    %v232 = vrot.slane %v162, 1
    %v233 = vrot.slane %v162, 2
    %v234 = vrot.slane %v162, 3
    %v235 = vrot.slane %v162, 4
    %v236 = vrot.slane %v162, 5
    %v237 = vrot.slane %v162, 6
    %v238 = vrot.slane %v162, 7
    %v239 = vperm.slane %v162, 0
    %v240 = vperm.slane %v232, 0
    %v241 = vperm.slane %v233, 0
    %v242 = vperm.slane %v234, 0
    %v243 = vperm.slane %v235, 0
    %v244 = vperm.slane %v236, 0
    %v245 = vperm.slane %v237, 0
    %v246 = vperm.slane %v238, 0
    %v255 = vadd.f32 %v239, %v208
    %v256 = vadd.f32 %v240, %v211
    %v257 = vadd.f32 %v241, %v214
    %v258 = vadd.f32 %v242, %v217
    %v259 = vadd.f32 %v243, %v220
    %v260 = vadd.f32 %v244, %v223
    %v261 = vadd.f32 %v245, %v226
    %v262 = vadd.f32 %v246, %v229
    %v263 = vld [vmem:[%s6] sm:$0x1]
    %v265 = vperm.slane %v263, 0
    %v267 = vadd.f32 %v255, %v265
    %v268 = vadd.f32 %v256, %v265
    %v269 = vadd.f32 %v257, %v265
    %v270 = vadd.f32 %v258, %v265
    %v271 = vadd.f32 %v259, %v265
    %v272 = vadd.f32 %v260, %v265
    %v273 = vadd.f32 %v261, %v265
    %v274 = vadd.f32 %v262, %v265
    %v275 = vmax.f32 %v267, 0.0
    %v276 = vmax.f32 %v268, 0.0
    %v277 = vmax.f32 %v269, 0.0
    %v278 = vmax.f32 %v270, 0.0
    %v279 = vmax.f32 %v271, 0.0
    %v280 = vmax.f32 %v272, 0.0
    %v281 = vmax.f32 %v273, 0.0
    %v282 = vmax.f32 %v274, 0.0
    %v283 = vld [vmem:[%s7] sm:$0x1]
    %v285 = vperm.slane %v283, 0
    %v287 = vrot.slane %v285, 1
    %v289 = vmul.f32 %v129, %v285
    %v290 = vmul.f32 %v130, %v287
    %293 = vst [vmem:[#allocation1] ss:$9 sm:$0xff] %v289
    %s294 = scalar_lea.vmem [#allocation1], 1
    %295 = vst [vmem:[%s294] ss:$9 sm:$0xff] %v290
    %v296 = vld [vmem:[#allocation1] sm:$0xff]
    %vm298 = vcmask 189440
    %v299 = vsel %vm298, %v296, 0.0
    %300 = vadd.xlane.f32.xlu0 %v299
    %v301 = vpop.xlane.xlu0 %300
    %v302 = vld [vmem:[%s8] sm:$0x1]
    %v304 = vperm.slane %v302, 0
    %v306 = vmul.f32 %v275, %v304
    %v307 = vmul.f32 %v276, %v304
    %v308 = vmul.f32 %v277, %v304
    %v309 = vmul.f32 %v278, %v304
    %v310 = vmul.f32 %v279, %v304
    %v311 = vmul.f32 %v280, %v304
    %v312 = vmul.f32 %v281, %v304
    %v313 = vmul.f32 %v282, %v304
    %vm314 = vcmask 261120
    %v315 = vsel %vm314, %v306, 0.0
    %316 = vadd.xlane.f32.xlu0 %v315
    %v317 = vpop.xlane.xlu0 %316
    %v318 = vsel %vm314, %v307, 0.0
    %319 = vadd.xlane.f32.xlu0 %v318
    %v320 = vpop.xlane.xlu0 %319
    %v321 = vsel %vm314, %v308, 0.0
    %322 = vadd.xlane.f32.xlu0 %v321
    %v323 = vpop.xlane.xlu0 %322
    %v324 = vsel %vm314, %v309, 0.0
    %325 = vadd.xlane.f32.xlu0 %v324
    %v326 = vpop.xlane.xlu0 %325
    %v327 = vsel %vm314, %v310, 0.0
    %328 = vadd.xlane.f32.xlu0 %v327
    %v329 = vpop.xlane.xlu0 %328
    %v330 = vsel %vm314, %v311, 0.0
    %331 = vadd.xlane.f32.xlu0 %v330
    %v332 = vpop.xlane.xlu0 %331
    %v333 = vsel %vm314, %v312, 0.0
    %334 = vadd.xlane.f32.xlu0 %v333
    %v335 = vpop.xlane.xlu0 %334
    %v336 = vsel %vm314, %v313, 0.0
    %337 = vadd.xlane.f32.xlu0 %v336
    %v338 = vpop.xlane.xlu0 %337
    %s339 = sld [smem:[#allocation2]]
    %v340 = vstv %s339
    %v341 = vmul.f32 %v131, %v340
    %v342 = vmul.f32 %v132, %v340
    %345 = vst [vmem:[#allocation1] ss:$2 sm:$0xff] %v341
    %s346 = scalar_lea.vmem [#allocation1], 1
    %347 = vst [vmem:[%s346] ss:$2 sm:$0xff] %v342
    %v348 = vld.sshfl [vmem:[#allocation1] sm:$0xff pattern:$0x75316420]
    %v349 = vperm.slane %v348, 0
    %v350 = vlaneseq
    %v351 = vshrl.u32 %v350, 7
    %353 = vset.pattern.permute.xlu0 %v351
    %354 = vperm.xlu0 %353, %v349
    %v355 = vpop.permute.xlu0 %354
    %v356 = vperm.slane %v348, 1
    %v357 = vlaneseq
    %v358 = vshrl.u32 %v357, 7
    %360 = vset.pattern.permute.xlu0 %v358
    %361 = vperm.xlu0 %360, %v356
    %v362 = vpop.permute.xlu0 %361
    %v363 = vperm.slane %v348, 2
    %v364 = vlaneseq
    %v365 = vshrl.u32 %v364, 7
    %367 = vset.pattern.permute.xlu0 %v365
    %368 = vperm.xlu0 %367, %v363
    %v369 = vpop.permute.xlu0 %368
    %v370 = vperm.slane %v348, 3
    %v371 = vlaneseq
    %v372 = vshrl.u32 %v371, 7
    %374 = vset.pattern.permute.xlu0 %v372
    %375 = vperm.xlu0 %374, %v370
    %v376 = vpop.permute.xlu0 %375
    %v377 = vperm.slane %v348, 4
    %v378 = vlaneseq
    %v379 = vshrl.u32 %v378, 7
    %381 = vset.pattern.permute.xlu0 %v379
    %382 = vperm.xlu0 %381, %v377
    %v383 = vpop.permute.xlu0 %382
    %v384 = vperm.slane %v348, 5
    %v385 = vlaneseq
    %v386 = vshrl.u32 %v385, 7
    %388 = vset.pattern.permute.xlu0 %v386
    %389 = vperm.xlu0 %388, %v384
    %v390 = vpop.permute.xlu0 %389
    %v391 = vperm.slane %v348, 6
    %v392 = vlaneseq
    %v393 = vshrl.u32 %v392, 7
    %395 = vset.pattern.permute.xlu0 %v393
    %396 = vperm.xlu0 %395, %v391
    %v397 = vpop.permute.xlu0 %396
    %v398 = vperm.slane %v348, 7
    %v399 = vlaneseq
    %v400 = vshrl.u32 %v399, 7
    %402 = vset.pattern.permute.xlu0 %v400
    %403 = vperm.xlu0 %402, %v398
    %v404 = vpop.permute.xlu0 %403
    %v413 = vadd.f32 %v317, %v355
    %v414 = vadd.f32 %v320, %v362
    %v415 = vadd.f32 %v323, %v369
    %v416 = vadd.f32 %v326, %v376
    %v417 = vadd.f32 %v329, %v383
    %v418 = vadd.f32 %v332, %v390
    %v419 = vadd.f32 %v335, %v397
    %v420 = vadd.f32 %v338, %v404
    %s421 = sld [smem:[#allocation3]]
    %v422 = vstv %s421
    %v423 = vadd.f32 %v413, %v422
    %v424 = vadd.f32 %v414, %v422
    %v425 = vadd.f32 %v415, %v422
    %v426 = vadd.f32 %v416, %v422
    %v427 = vadd.f32 %v417, %v422
    %v428 = vadd.f32 %v418, %v422
    %v429 = vadd.f32 %v419, %v422
    %v430 = vadd.f32 %v420, %v422
    %v432 = vperm.slane %v301, 0
    %v433 = vperm.slane %v301, 1
    %v436 = vadd.f32 %v423, %v432
    %v437 = vadd.f32 %v424, %v432
    %v438 = vadd.f32 %v425, %v432
    %v439 = vadd.f32 %v426, %v432
    %v440 = vadd.f32 %v427, %v433
    %v441 = vadd.f32 %v428, %v433
    %v442 = vadd.f32 %v429, %v433
    %v443 = vadd.f32 %v430, %v433
    %452 = vset.pattern.permute.xlu0 0
    %453 = vperm.xlu0 %452, %v436
    %v454 = vpop.permute.xlu0 %453
    %455 = vset.pattern.permute.xlu0 0
    %456 = vperm.xlu0 %455, %v437
    %v457 = vpop.permute.xlu0 %456
    %458 = vset.pattern.permute.xlu0 0
    %459 = vperm.xlu0 %458, %v438
    %v460 = vpop.permute.xlu0 %459
    %461 = vset.pattern.permute.xlu0 0
    %462 = vperm.xlu0 %461, %v439
    %v463 = vpop.permute.xlu0 %462
    %464 = vset.pattern.permute.xlu0 0
    %465 = vperm.xlu0 %464, %v440
    %v466 = vpop.permute.xlu0 %465
    %467 = vset.pattern.permute.xlu0 0
    %468 = vperm.xlu0 %467, %v441
    %v469 = vpop.permute.xlu0 %468
    %470 = vset.pattern.permute.xlu0 0
    %471 = vperm.xlu0 %470, %v442
    %v472 = vpop.permute.xlu0 %471
    %473 = vset.pattern.permute.xlu0 0
    %474 = vperm.xlu0 %473, %v443
    %v475 = vpop.permute.xlu0 %474
    %v476 = vlaneseq
    %v477 = vand.u32 %v476, 127
    %v478 = vperm.slane %v454, %v477
    %v479 = vperm.slane %v457, %v477
    %v480 = vperm.slane %v460, %v477
    %v481 = vperm.slane %v463, %v477
    %v482 = vperm.slane %v466, %v477
    %v483 = vperm.slane %v469, %v477
    %v484 = vperm.slane %v472, %v477
    %v485 = vperm.slane %v475, %v477
    %vm486 = vcmask 1041409
    %v487 = vsel %vm486, %v479, %v478
    %vm488 = vcmask 1042434
    %v489 = vsel %vm488, %v480, %v487
    %vm490 = vcmask 1043459
    %v491 = vsel %vm490, %v481, %v489
    %v492 = vsel %vm486, %v483, %v482
    %v493 = vsel %vm488, %v484, %v492
    %v494 = vsel %vm490, %v485, %v493
    %vm497 = vcmask 60416
    %498 = vst.msk [vmem:[#allocation13] sm:$0xf] %vm497, %v491
    %499 = vst.msk [vmem:[#allocation13 + $0x4] sm:$0xf] %vm497, %v494
    // Predicated region
    $region66: #{tpu_custom_call.1} parent=1 // pred_check
      _
    $region67: #{tpu_custom_call.1} parent=1 // pred_check_branch
      %501 = sbr.rel (0) target = $region69
    $region68: #{tpu_custom_call.1} parent=1 // pred_region
      %503 = vsyncadd [#allocation6], 0
      %s504 = sshll.u32 [#allocation13], 4
      %s505 = int_to_ptr.vmem [resolvable:$true] %s504
      %s506 = sshll.u32 %s11, 4
      %s507 = int_to_ptr.hbm [resolvable:$true] %s506
      %512 = dma.vmem_to_hbm [thread:$0]  %s505, 128, %s507, [#allocation6], 64, 64, 4
    $region69: #{tpu_custom_call.1} parent=1 // pred_fallthru
      _
    // Predicated region
    $region70: #{tpu_custom_call.1} parent=1 // pred_check
      _
    $region71: #{tpu_custom_call.1} parent=1 // pred_check_branch
      %514 = sbr.rel (0) target = $region73
    $region72: #{tpu_custom_call.1} parent=1 // pred_region
      %516 = dma.done [#allocation6], 128
    $region73: #{tpu_custom_call.1} parent=1 // pred_fallthru
      _
    %517 = vsyncpa [#allocation5], 1
    %518 = vsyncpa [#allocation8], 1
    %519 = vsyncpa [#allocation11], 1
    %520 = vsyncpa [#allocation6], 1

</llo_original>
